<compile_context>
chip_gen: v6e
topology: v6e:2x2x1
jax: 0.10.0
libtpu: 0.0.40
codegen_flags: <defaults>
</compile_context>

<pallas_src>
import functools

import jax
import jax.numpy as jnp
from jax import lax
from jax.experimental import pallas as pl
from jax.experimental.pallas import tpu as pltpu


# ----------------------------------------------------------------------------- kernel

def _ce_kernel(batch, z_ref, r_ref, out_ref, acc_ref):
    """Per-tile CE partial sums.  out_ref: (1, 8, 128) lane-dense per-core partial."""
    c = pl.program_id(0)            # parallel (per-TensorCore) axis
    i = pl.program_id(1)            # sequential batch-tile axis (carries the accumulator)
    nb = pl.num_programs(1)

    @pl.when(i == 0)
    def _():
        acc_ref[0] = jnp.float32(0.0)

    z = z_ref[...].astype(jnp.float32)                                 # [TB, N]
    m = jnp.max(z, axis=1, keepdims=True)                              # [TB, 1]
    shifted = z - m                                                    # [TB, N]
    lse = jnp.log(jnp.sum(jnp.exp(shifted), axis=1, keepdims=True))    # [TB, 1]

    # -(log_softmax(z) * r).sum(1) == sum_lanes( r * (lse - shifted) ): a single
    # cross-lane reduction, log_softmax never materialized.  r is not assumed binary,
    # so it is multiplied (not used as a select mask).
    ce_rows = jnp.sum(r_ref[...].astype(jnp.float32) * (lse - shifted),
                      axis=1, keepdims=True)                           # [TB, 1]

    # Mask padded rows of the last (ragged) tile: cheap, only a [TB, 1] select.
    tb = z_ref.shape[0]
    row0 = (c * nb + i) * tb
    rows = row0 + lax.broadcasted_iota(jnp.int32, (tb, 1), 0)
    ce_rows = jnp.where(rows < batch, ce_rows, 0.0)

    acc_ref[0] = acc_ref[0] + jnp.sum(ce_rows)

    @pl.when(i == nb - 1)
    def _():
        # Lane-dense per-core partial; the wrapper sums over the parallel axis and
        # applies the 1/B scaling.
        out_ref[...] = jnp.full(out_ref.shape, acc_ref[0], dtype=jnp.float32)


# --------------------------------------------------------------------------- wrapper

def _vmem_budgets():
    """(in-flight working-set budget, scoped vmem limit) derived from physical VMEM."""
    cap = 64 * 1024 * 1024                      # conservative default (v7x-class, per TC)
    try:
        cap = int(getattr(pltpu.get_tpu_info(), "vmem_capacity_bytes", cap))
    except Exception:
        pass
    working_set = int(cap * 0.55)               # input double-buffers + f32 temporaries
    vmem_limit = int(cap * 0.75)                # leave headroom for compiler scratch
    return working_set, vmem_limit


def _pick_batch_tile(batch, n_items, z_itemsize, r_itemsize, working_set_bytes,
                     max_batch_tile=None):
    """Largest sublane-aligned batch tile that fits the working-set budget while
    still giving >= ~4 grid steps (so DMA/compute overlap)."""
    min_sub = {4: 8, 2: 16, 1: 32}.get(min(z_itemsize, r_itemsize), 8)
    # Per batch-row VMEM while one tile is in flight:
    #   z + rating input tiles, double-buffered ............ 2 * (sz + sr) * N
    #   in-kernel f32 temporaries (~4 full-tile arrays) .... 4 * 4 * N
    per_row = 2 * (z_itemsize + r_itemsize) * n_items + 16 * n_items
    cap = max(1, working_set_bytes // per_row)
    cap = min(cap, max(1, -(-batch // 4)))       # keep >= ~4 grid steps
    if max_batch_tile is not None:
        cap = min(cap, max_batch_tile)
    tb = (cap // min_sub) * min_sub              # sublane-aligned
    if tb <= 0 or tb >= batch:
        return batch                             # tiny batch: one full block (legal)
    return tb


def cekl_loss_pallas(z, mu, logvar, rating_matrix, anneal, *, max_batch_tile=None):
    assert z.ndim == 2 and z.shape == rating_matrix.shape
    assert mu.ndim == 2 and mu.shape == logvar.shape and mu.shape[0] == z.shape[0]
    B, N = z.shape

    working_set, vmem_limit = _vmem_budgets()
    tb = _pick_batch_tile(B, N,
                          jnp.dtype(z.dtype).itemsize,
                          jnp.dtype(rating_matrix.dtype).itemsize,
                          working_set, max_batch_tile)
    nb_total = -(-B // tb)                       # cdiv
    # Split the tile loop across TensorCores on 2-core chips (v7x); harmless
    # (purely sequential) on single-core chips.
    if nb_total % 2 == 0 and nb_total >= 8:
        num_cores, nb = 2, nb_total // 2
    else:
        num_cores, nb = 1, nb_total

    kernel = functools.partial(_ce_kernel, B)
    ce_partials = pl.pallas_call(
        kernel,
        out_shape=jax.ShapeDtypeStruct((num_cores, 8, 128), jnp.float32),
        grid_spec=pltpu.PrefetchScalarGridSpec(
            num_scalar_prefetch=0,
            grid=(num_cores, nb),
            in_specs=[
                pl.BlockSpec((tb, N), lambda c, i, _nb=nb: (c * _nb + i, 0)),  # z
                pl.BlockSpec((tb, N), lambda c, i, _nb=nb: (c * _nb + i, 0)),  # ratings
            ],
            out_specs=pl.BlockSpec((1, 8, 128), lambda c, i: (c, 0, 0)),
            scratch_shapes=[pltpu.SMEM((1,), jnp.float32)],   # running CE sum (per core)
        ),
        compiler_params=pltpu.CompilerParams(
            dimension_semantics=("parallel", "arbitrary"),
            vmem_limit_bytes=vmem_limit,
        ),
    )(z, rating_matrix)

    ce_loss = jnp.sum(ce_partials[:, 0, 0]) / jnp.float32(B)

    # KL over the tiny [B, D_latent] latents in plain JAX (negligible HBM traffic;
    # keeping it in the kernel only added lane-sparse D<<128 DMA streams).
    lv = logvar.astype(jnp.float32)
    m32 = mu.astype(jnp.float32)
    kl_sum = jnp.sum(1.0 + lv - m32 * m32 - jnp.exp(lv))
    kl_loss = jnp.float32(-0.5) * (kl_sum / jnp.float32(B)) * jnp.float32(anneal)

    return ce_loss + kl_loss


class CEKLLoss:
    """Mirrors the PyTorch module: the update counter / anneal schedule stays in
    Python; the heavy CE reduction runs in the Pallas kernel."""

    def __init__(self, anneal_cap=0.2, total_anneal_steps=200000):
        self.update = 0
        self.anneal_cap = anneal_cap
        self.total_anneal_steps = total_anneal_steps
        self.last_anneal = None

    def __call__(self, z, mu, logvar, rating_matrix, *, max_batch_tile=None):
        self.update += 1
        if self.total_anneal_steps > 0:
            anneal = min(self.anneal_cap, 1.0 * self.update / self.total_anneal_steps)
        else:
            anneal = self.anneal_cap
        self.last_anneal = anneal
        return cekl_loss_pallas(z, mu, logvar, rating_matrix, anneal,
                                max_batch_tile=max_batch_tile)


# ----------------------------------------------------------------------------- check

def _ref_loss(z, mu, logvar, rating_matrix, anneal):
    zf = z.astype(jnp.float32)
    rf = rating_matrix.astype(jnp.float32)
    log_sm = jax.nn.log_softmax(zf, axis=1)
    ce = -jnp.mean(jnp.sum(log_sm * rf, axis=1))
    lv = logvar.astype(jnp.float32)
    mf = mu.astype(jnp.float32)
    kl = -0.5 * jnp.mean(jnp.sum(1.0 + lv - mf ** 2 - jnp.exp(lv), axis=1)) * anneal
    return ce + kl


if __name__ == "__main__":
    N_ITEMS, D_LATENT = 256, 32
    loss_mod = CEKLLoss(anneal_cap=0.2, total_anneal_steps=200000)

    def make(bkey, batch, dtype):
        k1, k2, k3, k4 = jax.random.split(bkey, 4)
        z = jax.random.normal(k1, (batch, N_ITEMS), dtype=jnp.float32).astype(dtype)
        mu = jax.random.normal(k2, (batch, D_LATENT), dtype=jnp.float32)
        logvar = 0.1 * jax.random.normal(k3, (batch, D_LATENT), dtype=jnp.float32)
        rating = (jax.random.uniform(k4, (batch, N_ITEMS)) < 0.1).astype(dtype)
        return z, mu, logvar, rating

    checks = [
        (32, jnp.float32, None),   # grid (1,4): init / accumulate / finalize path
        (36, jnp.float32, None),   # ragged batch -> last-tile row mask (grid (1,5))
        (64, jnp.float32, 8),      # grid (2,4): per-core partials + wrapper sum
        (64, jnp.bfloat16, None),  # bf16 inputs (halved HBM traffic), grid (1,4)
    ]
    keys = jax.random.split(jax.random.PRNGKey(0), len(checks))
    for bkey, (batch, dtype, mbt) in zip(keys, checks):
        z, mu, logvar, rating = make(bkey, batch, dtype)
        loss = loss_mod(z, mu, logvar, rating, max_batch_tile=mbt)
        loss = jax.block_until_ready(loss)
        ref = _ref_loss(z, mu, logvar, rating, loss_mod.last_anneal)
        assert jnp.allclose(loss, ref, rtol=1e-4, atol=1e-4), (batch, dtype, loss, ref)

    # default (auto) tile selection once more
    z, mu, logvar, rating = make(jax.random.PRNGKey(1), 32, jnp.float32)
    loss = jax.block_until_ready(loss_mod(z, mu, logvar, rating))
    ref = _ref_loss(z, mu, logvar, rating, loss_mod.last_anneal)
    assert jnp.allclose(loss, ref, rtol=1e-4, atol=1e-4), (loss, ref)

    print("KERNEL_OK")
</pallas_src>

<mosaic_0001>
module attributes {stable_mosaic.version = 11 : i64} {
  func.func @_ce_kernel(%arg0: i32, %arg1: i32, %arg2: memref<8x256xf32, #tpu.memory_space<vmem>>, %arg3: memref<8x256xf32, #tpu.memory_space<vmem>>, %arg4: memref<1x8x128xf32, #tpu.memory_space<vmem>>, %arg5: memref<1xf32, #tpu.memory_space<smem>>) attributes {dimension_semantics = [#tpu.dimension_semantics<parallel>, #tpu.dimension_semantics<arbitrary>], iteration_bounds = array<i64: 1, 4>, scalar_prefetch = 0 : i64, scratch_operands = 1 : i64, tpu.core_type = #tpu.core_type<tc>, window_params = [{transform_indices = @transform_0, window_bounds = array<i64: 8, 256>}, {transform_indices = @transform_1, window_bounds = array<i64: 8, 256>}, {transform_indices = @transform_2, window_bounds = array<i64: 1, 8, 128>}]} {
    %c0_i32 = arith.constant 0 : i32
    %0 = arith.cmpi eq, %arg1, %c0_i32 : i32
    %1 = arith.extui %0 : i1 to i32
    %c0_i32_0 = arith.constant 0 : i32
    %2 = arith.cmpi ne, %1, %c0_i32_0 : i32
    scf.if %2 {
      %cst_11 = arith.constant 0.000000e+00 : f32
      %c0_12 = arith.constant 0 : index
      %38 = memref.load %arg5[%c0_12] : memref<1xf32, #tpu.memory_space<smem>>
      memref.store %cst_11, %arg5[%c0_12] : memref<1xf32, #tpu.memory_space<smem>>
    } else {
    }
    %c0 = arith.constant 0 : index
    %c0_1 = arith.constant 0 : index
    %3 = vector.load %arg2[%c0, %c0_1] : memref<8x256xf32, #tpu.memory_space<vmem>>, vector<8x256xf32>
    %cst = arith.constant dense<0xFF800000> : vector<8xf32>
    %4 = vector.multi_reduction <maximumf>, %3, %cst [1] : vector<8x256xf32> to vector<8xf32>
    %5 = vector.shape_cast %4 : vector<8xf32> to vector<8x1xf32>
    %6 = vector.broadcast %5 : vector<8x1xf32> to vector<8x256xf32>
    %7 = arith.subf %3, %6 : vector<8x256xf32>
    %8 = math.exp %7 : vector<8x256xf32>
    %cst_2 = arith.constant dense<0.000000e+00> : vector<8xf32>
    %9 = vector.multi_reduction <add>, %8, %cst_2 [1] : vector<8x256xf32> to vector<8xf32>
    %10 = vector.shape_cast %9 : vector<8xf32> to vector<8x1xf32>
    %11 = math.log %10 : vector<8x1xf32>
    %c0_3 = arith.constant 0 : index
    %c0_4 = arith.constant 0 : index
    %12 = vector.load %arg3[%c0_3, %c0_4] : memref<8x256xf32, #tpu.memory_space<vmem>>, vector<8x256xf32>
    %13 = vector.broadcast %11 : vector<8x1xf32> to vector<8x256xf32>
    %14 = arith.subf %13, %7 : vector<8x256xf32>
    %15 = arith.mulf %12, %14 : vector<8x256xf32>
    %cst_5 = arith.constant dense<0.000000e+00> : vector<8xf32>
    %16 = vector.multi_reduction <add>, %15, %cst_5 [1] : vector<8x256xf32> to vector<8xf32>
    %17 = vector.shape_cast %16 : vector<8xf32> to vector<8x1xf32>
    %c4_i32 = arith.constant 4 : i32
    %18 = arith.muli %arg0, %c4_i32 : i32
    %19 = arith.addi %18, %arg1 : i32
    %c8_i32 = arith.constant 8 : i32
    %20 = arith.muli %19, %c8_i32 : i32
    %21 = tpu.iota {dimensions = array<i32: 0>} : vector<8x1xi32>
    %22 = vector.broadcast %20 : i32 to vector<8x1xi32>
    %23 = arith.addi %22, %21 : vector<8x1xi32>
    %c32_i32 = arith.constant 32 : i32
    %24 = vector.broadcast %c32_i32 : i32 to vector<8x1xi32>
    %25 = arith.cmpi slt, %23, %24 : vector<8x1xi32>
    %cst_6 = arith.constant 0.000000e+00 : f32
    %26 = vector.broadcast %cst_6 : f32 to vector<8x1xf32>
    %27 = arith.select %25, %17, %26 : vector<8x1xi1>, vector<8x1xf32>
    %c0_7 = arith.constant 0 : index
    %28 = memref.load %arg5[%c0_7] : memref<1xf32, #tpu.memory_space<smem>>
    %29 = vector.shape_cast %27 : vector<8x1xf32> to vector<1x8x1xf32>
    %cst_8 = arith.constant dense<0.000000e+00> : vector<1xf32>
    %30 = vector.multi_reduction <add>, %29, %cst_8 [1, 2] : vector<1x8x1xf32> to vector<1xf32>
    %31 = vector.shape_cast %30 : vector<1xf32> to vector<1x1x1xf32>
    %32 = vector.extract %31[0, 0, 0] : f32 from vector<1x1x1xf32>
    %33 = arith.addf %28, %32 : f32
    %c0_9 = arith.constant 0 : index
    %34 = memref.load %arg5[%c0_9] : memref<1xf32, #tpu.memory_space<smem>>
    memref.store %33, %arg5[%c0_9] : memref<1xf32, #tpu.memory_space<smem>>
    %c3_i32 = arith.constant 3 : i32
    %35 = arith.cmpi eq, %arg1, %c3_i32 : i32
    %36 = arith.extui %35 : i1 to i32
    %c0_i32_10 = arith.constant 0 : i32
    %37 = arith.cmpi ne, %36, %c0_i32_10 : i32
    scf.if %37 {
      %c0_11 = arith.constant 0 : index
      %38 = memref.load %arg5[%c0_11] : memref<1xf32, #tpu.memory_space<smem>>
      %39 = vector.broadcast %38 : f32 to vector<1x8x128xf32>
      %c0_12 = arith.constant 0 : index
      %c0_13 = arith.constant 0 : index
      %c0_14 = arith.constant 0 : index
      %40 = vector.load %arg4[%c0_12, %c0_13, %c0_14] : memref<1x8x128xf32, #tpu.memory_space<vmem>>, vector<1x8x128xf32>
      tpu.vector_store %arg4[%c0_12, %c0_13, %c0_14], %39 {strides = array<i32>} : memref<1x8x128xf32, #tpu.memory_space<vmem>>, vector<1x8x128xf32>,
    } else {
    }
    return
  }
  func.func @transform_0(%arg0: i32, %arg1: i32) -> (i32, i32) {
    %c4_i32 = arith.constant 4 : i32
    %0 = arith.muli %arg0, %c4_i32 : i32
    %1 = arith.addi %0, %arg1 : i32
    %c0_i32 = arith.constant 0 : i32
    %c0_i32_0 = arith.constant 0 : i32
    return %1, %c0_i32 : i32, i32
  }
  func.func @transform_1(%arg0: i32, %arg1: i32) -> (i32, i32) {
    %c4_i32 = arith.constant 4 : i32
    %0 = arith.muli %arg0, %c4_i32 : i32
    %1 = arith.addi %0, %arg1 : i32
    %c0_i32 = arith.constant 0 : i32
    %c0_i32_0 = arith.constant 0 : i32
    return %1, %c0_i32 : i32, i32
  }
  func.func @transform_2(%arg0: i32, %arg1: i32) -> (i32, i32, i32) {
    %c0_i32 = arith.constant 0 : i32
    %c0_i32_0 = arith.constant 0 : i32
    %c0_i32_1 = arith.constant 0 : i32
    return %arg0, %c0_i32, %c0_i32_0 : i32, i32, i32
  }
}

</mosaic_0001>

<llo_original>
// kernel: tpu_custom_call.1
$region0: #{tpu_custom_call.1}
  #allocation0 [shape = 'u32[]', space=smem, size = 0x4, offset = 0x4, fixed_abs, tag = 'smem constant byte address 0x4 - core index']
  #allocation1 [shape = 'u32[144,128]{1,0:T(1,128)}', space=vmem, size = 0x12000, scoped, tag = 'internal scratch']
  #allocation2 [shape = 'f32[1]{0:T(128)}', space=smem, size = 0x200, scoped, tag = 'scratch operand']
  %s0 = inlined_call_operand.hbm [shape: f32[32,256], index: 0, kind: input, shape index: {}]
  %s1 = inlined_call_operand.hbm [shape: f32[32,256], index: 1, kind: input, shape index: {}]
  %s2 = inlined_call_operand.hbm [shape: f32[1,8,128], index: 2, kind: output, shape index: {}]
  %s3 = sld [smem:[#allocation0]]
  $region57: #{tpu_custom_call.1} parent=0
    _
  %s5 = ssub.s32 1, %s3
  %s6 = scalar_select 0, %s5, %s3
  $region1: #{tpu_custom_call.1} parent=0
    #allocation3 [shape = 'u8[16384]{0}', space=vmem, size = 0x4000, scoped, tag = 'input window, operand 0']
    #allocation4 [shape = 's32[2]{0}', space=sflag, size = 0x8, scoped, tag = 'scoped memory for tpu_custom_call.1']
    #allocation5 [shape = 's32[2]{0}', space=sflag, size = 0x8, scoped, tag = 'scoped memory for tpu_custom_call.1']
    #allocation6 [shape = 'u8[16384]{0}', space=vmem, size = 0x4000, scoped, tag = 'input window, operand 1']
    #allocation7 [shape = 's32[2]{0}', space=sflag, size = 0x8, scoped, tag = 'scoped memory for tpu_custom_call.1']
    #allocation8 [shape = 'u8[4096]{0}', space=vmem, size = 0x1000, scoped, tag = 'output window, operand 0, single buffered']
    %7 = vsyncpa [#allocation4], 0
    %s8 = scalar_lea.sflag [#allocation4], 1
    %9 = vsyncpa %s8, 0
    %10 = vsyncpa [#allocation7], 0
    %s11 = scalar_lea.sflag [#allocation7], 1
    %12 = vsyncpa %s11, 0
    %13 = vsyncpa [#allocation5], 0
    loop: start=0, step=1, limit=6
    $region2: #{tpu_custom_call.1} parent=1 // loop_pre_header
      _
    $region3: #{tpu_custom_call.1} parent=1 // loop_header
      %s15 = sphi 0, %s19
      %p16 = scmp.ge.s32.totalorder %s15, 6
      %s22 = sphi 0, %s34
      %s23 = sphi 0, %s30
      %s24 = sphi 0, %s22
      %s25 = sphi 0, %s23
      %s26 = sphi 0, %s24
      %s27 = sphi 0, %s25
      %s41 = sphi 0, %s43
      %s44 = sphi 0, %s41
      %s45 = sphi 0, %s44
      %s61 = sphi 0, %s45
      %s71 = sphi 0, %s73
      %s74 = sphi 0, %s71
      %s75 = sphi 0, %s74
      %s91 = sphi 0, %s75
      %s97 = sphi 0, %s99
      %s100 = sphi 0, %s97
      %s101 = sphi 0, %s100
      %s117 = sphi 0, %s101
    $region4: #{tpu_custom_call.1} parent=1 // loop_header_branch
      %18 = sbr.rel (%p16) target = $region8
    $region5: #{tpu_custom_call.1} parent=1 // loop_body
      %s20 = ssub.s32 %s15, 1
      %s21 = ssub.s32 %s15, 2
      %s28 = sadd.s32 1, %s23
      %p29 = scmp.ge.s32.totalorder %s28, 4
      %s30 = scalar_select %p29, 0, %s28
      %s31 = sadd.s32 1, %s22
      %s32 = scalar_select %p29, %s31, %s22
      %p33 = scmp.ge.s32.totalorder %s32, 1
      %s34 = scalar_select %p33, 0, %s32
      %s35 = smul.u32 %s22, 4
      %s36 = sadd.s32 %s35, %s23
      %s37 = smul.u32 %s34, 4
      %s38 = sadd.s32 %s37, %s30
      %s39 = ssub.s32 %s36, %s38
      %p40 = scmp.eq.s32.totalorder %s39, 0
      %s42 = sadd.s32 %s41, 1
      %s43 = scalar_select %p40, %s41, %s42
      %p46 = pneg %p40
      %p47 = scmp.eq.s32.totalorder %s15, 3
      %p48 = por %p46, %p47
      %p49 = scmp.ne.s32.totalorder %s41, %s44
      %p50 = scmp.eq.s32.totalorder %s15, 0
      %p51 = por %p49, %p50
      %p52 = scmp.ne.s32.totalorder %s41, %s44
      %p53 = scmp.eq.s32.totalorder %s20, 3
      %p54 = por %p52, %p53
      %p55 = scmp.ne.s32.totalorder %s44, %s45
      %p56 = scmp.eq.s32.totalorder %s20, 0
      %p57 = por %p55, %p56
      %p58 = scmp.ne.s32.totalorder %s44, %s45
      %p59 = scmp.eq.s32.totalorder %s21, 3
      %p60 = por %p58, %p59
      %p62 = scmp.ne.s32.totalorder %s45, %s61
      %p63 = scmp.eq.s32.totalorder %s21, 0
      %p64 = por %p62, %p63
      %s65 = smul.u32 %s22, 4
      %s66 = sadd.s32 %s65, %s23
      %s67 = smul.u32 %s34, 4
      %s68 = sadd.s32 %s67, %s30
      %s69 = ssub.s32 %s66, %s68
      %p70 = scmp.eq.s32.totalorder %s69, 0
      %s72 = sadd.s32 %s71, 1
      %s73 = scalar_select %p70, %s71, %s72
      %p76 = pneg %p70
      %p77 = scmp.eq.s32.totalorder %s15, 3
      %p78 = por %p76, %p77
      %p79 = scmp.ne.s32.totalorder %s71, %s74
      %p80 = scmp.eq.s32.totalorder %s15, 0
      %p81 = por %p79, %p80
      %p82 = scmp.ne.s32.totalorder %s71, %s74
      %p83 = scmp.eq.s32.totalorder %s20, 3
      %p84 = por %p82, %p83
      %p85 = scmp.ne.s32.totalorder %s74, %s75
      %p86 = scmp.eq.s32.totalorder %s20, 0
      %p87 = por %p85, %p86
      %p88 = scmp.ne.s32.totalorder %s74, %s75
      %p89 = scmp.eq.s32.totalorder %s21, 3
      %p90 = por %p88, %p89
      %p92 = scmp.ne.s32.totalorder %s75, %s91
      %p93 = scmp.eq.s32.totalorder %s21, 0
      %p94 = por %p92, %p93
      %s95 = ssub.s32 %s22, %s34
      %p96 = scmp.eq.s32.totalorder %s95, 0
      %s98 = sadd.s32 %s97, 1
      %s99 = scalar_select %p96, %s97, %s98
      %p102 = pneg %p96
      %p103 = scmp.eq.s32.totalorder %s15, 3
      %p104 = por %p102, %p103
      %p105 = scmp.ne.s32.totalorder %s97, %s100
      %p106 = scmp.eq.s32.totalorder %s15, 0
      %p107 = por %p105, %p106
      %p108 = scmp.ne.s32.totalorder %s97, %s100
      %p109 = scmp.eq.s32.totalorder %s20, 3
      %p110 = por %p108, %p109
      %p111 = scmp.ne.s32.totalorder %s100, %s101
      %p112 = scmp.eq.s32.totalorder %s20, 0
      %p113 = por %p111, %p112
      %p114 = scmp.ne.s32.totalorder %s100, %s101
      %p115 = scmp.eq.s32.totalorder %s21, 3
      %p116 = por %p114, %p115
      %p118 = scmp.ne.s32.totalorder %s101, %s117
      %p119 = scmp.eq.s32.totalorder %s21, 0
      %p120 = por %p118, %p119
      %p121 = scmp.le.s32.totalorder 1, %s15
      %p122 = scmp.lt.s32.totalorder %s15, 5
      %p123 = pnand %p121, %p122
      %p124 = pneg %p123
      // Predicated region
      $region9: #{tpu_custom_call.1} parent=5 // pred_check
        _
      $region10: #{tpu_custom_call.1} parent=5 // pred_check_branch
        %126 = sbr.rel (%p123) target = $region12
      $region11: #{tpu_custom_call.1} parent=5 // pred_region
        %s127 = ssub.s32 %s15, 1
      $region12: #{tpu_custom_call.1} parent=5 // pred_fallthru
        _
      %p128 = scmp.lt.s32.totalorder %s15, 4
      // Predicated region
      $region13: #{tpu_custom_call.1} parent=5 // pred_check
        %p129 = pneg %p128
      $region14: #{tpu_custom_call.1} parent=5 // pred_check_branch
        %131 = sbr.rel (%p129) target = $region16
      $region15: #{tpu_custom_call.1} parent=5 // pred_region
        // Predicated region
        $region17: #{tpu_custom_call.1} parent=15 // pred_check
          %p132 = pneg %p51
        $region18: #{tpu_custom_call.1} parent=15 // pred_check_branch
          %134 = sbr.rel (%p132) target = $region20
        $region19: #{tpu_custom_call.1} parent=15 // pred_region
          %s135 = sand.u32 %s41, 1
          %s136 = scalar_lea.sflag [#allocation4], %s135
          %s137 = sand.u32 %s41, 1
          %s138 = smul.addr %s137, 16
          %s139 = scalar_lea.vmem [#allocation3], %s138
          %s140 = smul.u32 %s22, 4
          %s141 = sadd.s32 %s140, %s23
          %s143 = ssub.s32 256, 256
          %144 = vsyncadd %s136, %s143
          %s145 = smul.addr %s141, 2
          %s146 = smul.addr %s145, 128
          %s147 = scalar_lea.hbm %s0, %s146
          %s149 = sshll.u32 %s139, 4
          %s150 = int_to_ptr.vmem [resolvable:$true] %s149
          %152 = dma.hbm_to_vmem [thread:$0]  %s147, 256, %s150, %s136
        $region20: #{tpu_custom_call.1} parent=15 // pred_fallthru
          _
        // Predicated region
        $region21: #{tpu_custom_call.1} parent=15 // pred_check
          %p153 = pneg %p81
        $region22: #{tpu_custom_call.1} parent=15 // pred_check_branch
          %155 = sbr.rel (%p153) target = $region24
        $region23: #{tpu_custom_call.1} parent=15 // pred_region
          %s156 = sand.u32 %s71, 1
          %s157 = scalar_lea.sflag [#allocation7], %s156
          %s158 = sand.u32 %s71, 1
          %s159 = smul.addr %s158, 16
          %s160 = scalar_lea.vmem [#allocation6], %s159
          %s161 = smul.u32 %s22, 4
          %s162 = sadd.s32 %s161, %s23
          %s164 = ssub.s32 256, 256
          %165 = vsyncadd %s157, %s164
          %s166 = smul.addr %s162, 2
          %s167 = smul.addr %s166, 128
          %s168 = scalar_lea.hbm %s1, %s167
          %s170 = sshll.u32 %s160, 4
          %s171 = int_to_ptr.vmem [resolvable:$true] %s170
          %173 = dma.hbm_to_vmem [thread:$0]  %s168, 256, %s171, %s157
        $region24: #{tpu_custom_call.1} parent=15 // pred_fallthru
          _
      $region16: #{tpu_custom_call.1} parent=5 // pred_fallthru
        _
      %p174 = scmp.le.s32.totalorder 1, %s15
      %p175 = scmp.lt.s32.totalorder %s15, 5
      %p176 = pnand %p174, %p175
      %p177 = pneg %p176
      // Predicated region
      $region25: #{tpu_custom_call.1} parent=5 // pred_check
        _
      $region26: #{tpu_custom_call.1} parent=5 // pred_check_branch
        %179 = sbr.rel (%p176) target = $region28
      $region27: #{tpu_custom_call.1} parent=5 // pred_region
        %s180 = ssub.s32 %s15, 1
        %s181 = sand.u32 %s44, 1
        %s182 = scalar_lea.sflag [#allocation4], %s181
        %s183 = sand.u32 %s44, 1
        %s184 = smul.addr %s183, 16
        %s185 = scalar_lea.vmem [#allocation3], %s184
        // Predicated region
        $region29: #{tpu_custom_call.1} parent=27 // pred_check
          %p186 = pneg %p57
        $region30: #{tpu_custom_call.1} parent=27 // pred_check_branch
          %188 = sbr.rel (%p186) target = $region32
        $region31: #{tpu_custom_call.1} parent=27 // pred_region
          %189 = dma.done %s182, 256
        $region32: #{tpu_custom_call.1} parent=27 // pred_fallthru
          _
        %s190 = sand.u32 %s74, 1
        %s191 = scalar_lea.sflag [#allocation7], %s190
        %s192 = sand.u32 %s74, 1
        %s193 = smul.addr %s192, 16
        %s194 = scalar_lea.vmem [#allocation6], %s193
        // Predicated region
        $region33: #{tpu_custom_call.1} parent=27 // pred_check
          %p195 = pneg %p87
        $region34: #{tpu_custom_call.1} parent=27 // pred_check_branch
          %197 = sbr.rel (%p195) target = $region36
        $region35: #{tpu_custom_call.1} parent=27 // pred_region
          %198 = dma.done %s191, 256
        $region36: #{tpu_custom_call.1} parent=27 // pred_fallthru
          _
        %s199 = sand.u32 %s44, 1
        %s200 = scalar_lea.sflag [#allocation4], %s199
        %s201 = sand.u32 %s44, 1
        %s202 = smul.addr %s201, 16
        %s203 = scalar_lea.vmem [#allocation3], %s202
        %p204 = pneg %p57
        %p205 = pneg %p54
        %s206 = sand.u32 %s74, 1
        %s207 = scalar_lea.sflag [#allocation7], %s206
        %s208 = sand.u32 %s74, 1
        %s209 = smul.addr %s208, 16
        %s210 = scalar_lea.vmem [#allocation6], %s209
        %p211 = pneg %p87
        %p212 = pneg %p84
        %p213 = pneg %p113
        %p214 = pneg %p110
        %s215 = smul.u32 %s24, 4
        %s216 = sadd.s32 %s215, %s25
        %s217 = smul.u32 %s24, 4
        %s218 = sadd.s32 %s217, %s25
        %p219 = scmp.eq.s32.totalorder %s25, 0
        // Predicated region
        $region37: #{tpu_custom_call.1} parent=27 // pred_check
          %p220 = pneg %p219
        $region38: #{tpu_custom_call.1} parent=27 // pred_check_branch
          %222 = sbr.rel (%p220) target = $region40
        $region39: #{tpu_custom_call.1} parent=27 // pred_region
          %s223 = scalar_lea.smem [#allocation2], 0
          %224 = sst [smem:[%s223]] 0.0
        $region40: #{tpu_custom_call.1} parent=27 // pred_fallthru
          _
        %v225 = vld [vmem:[%s185] sm:$0xff]
        %v226 = vld [vmem:[%s185 + $0x8] sm:$0xff]
        %v227 = vmax.f32 %v225, %v226
        %228 = vmax.xlane.f32.xlu0 %v227
        %v229 = vpop.xlane.xlu0 %228
        %v230 = vsub.f32 %v225, %v229
        %v231 = vsub.f32 %v226, %v229
        %v232 = vmul.f32 %v230, 1.442695
        %v233 = vpow.pop %v232
        %v234 = vmul.f32 %v231, 1.442695
        %v235 = vpow.pop %v234
        %v236 = vadd.f32 %v233, %v235
        %237 = vadd.xlane.f32.xlu0 %v236
        %v238 = vpop.xlane.xlu0 %237
        %v239 = vlog2.pop %v238
        %v240 = vmul.f32 %v239, 0.6931472
        %v241 = vld [vmem:[%s194] sm:$0xff]
        %v242 = vld [vmem:[%s194 + $0x8] sm:$0xff]
        %v243 = vsub.f32 %v240, %v230
        %v244 = vsub.f32 %v240, %v231
        %v245 = vmul.f32 %v241, %v243
        %v246 = vmul.f32 %v242, %v244
        %v247 = vadd.f32 %v245, %v246
        %248 = vadd.xlane.f32.xlu0 %v247
        %v249 = vpop.xlane.xlu0 %248
        %s250 = smul.u32 %s24, 4
        %s251 = sadd.s32 %s250, %s25
        %s252 = smul.u32 %s251, 8
        %v253 = vlaneseq
        %v254 = vshrl.u32 %v253, 7
        %v255 = vstv %s252
        %v256 = vadd.s32 %v255, %v254
        %vm257 = vcmp.lt.s32.totalorder %v256, 32
        %v258 = vsel %vm257, %v249, 0.0
        %s259 = sld [smem:[#allocation2]]
        %vm260 = vcmask 7168
        %v261 = vsel %vm260, %v258, 0.0
        %262 = vadd.xlane.f32.xlu0 %v261
        %v263 = vpop.xlane.xlu0 %262
        %v264 = vrot.slane %v263, 4
        %v265 = vadd.f32 %v263, %v264
        %v266 = vrot.slane %v265, 2
        %v267 = vadd.f32 %v265, %v266
        %v268 = vrot.slane %v267, 1
        %v269 = vadd.f32 %v267, %v268
        %s270 = vtos %v269
        %s271 = sadd.f32 %s259, %s270
        %s272 = scalar_lea.smem [#allocation2], 0
        %273 = sst [smem:[%s272]] %s271
        %p274 = scmp.eq.s32.totalorder %s25, 3
        // Predicated region
        $region41: #{tpu_custom_call.1} parent=27 // pred_check
          %p275 = pneg %p274
        $region42: #{tpu_custom_call.1} parent=27 // pred_check_branch
          %277 = sbr.rel (%p275) target = $region44
        $region43: #{tpu_custom_call.1} parent=27 // pred_region
          %s278 = sld [smem:[#allocation2]]
          %v279 = vstv %s278
          %280 = vst [vmem:[#allocation8] sm:$0xff] %v279
        $region44: #{tpu_custom_call.1} parent=27 // pred_fallthru
          _
        // Predicated region
        $region45: #{tpu_custom_call.1} parent=27 // pred_check
          %p281 = pneg %p110
        $region46: #{tpu_custom_call.1} parent=27 // pred_check_branch
          %283 = sbr.rel (%p281) target = $region48
        $region47: #{tpu_custom_call.1} parent=27 // pred_region
          %s285 = ssub.s32 128, 128
          %286 = vsyncadd [#allocation5], %s285
          %s287 = smul.addr %s24, 128
          %s288 = scalar_lea.hbm %s2, %s287
          %s290 = sshll.u32 [#allocation8], 4
          %s291 = int_to_ptr.vmem [resolvable:$true] %s290
          %293 = dma.vmem_to_hbm [thread:$0]  %s291, 128, %s288, [#allocation5]
        $region48: #{tpu_custom_call.1} parent=27 // pred_fallthru
          _
        // Predicated region
        $region49: #{tpu_custom_call.1} parent=27 // pred_check
          %p294 = pneg %p110
        $region50: #{tpu_custom_call.1} parent=27 // pred_check_branch
          %296 = sbr.rel (%p294) target = $region52
        $region51: #{tpu_custom_call.1} parent=27 // pred_region
          %297 = dma.done [#allocation5], 128
        $region52: #{tpu_custom_call.1} parent=27 // pred_fallthru
          _
      $region28: #{tpu_custom_call.1} parent=5 // pred_fallthru
        _
      %p298 = scmp.le.s32.totalorder 2, %s15
      // Predicated region
      $region53: #{tpu_custom_call.1} parent=5 // pred_check
        %p299 = pneg %p298
      $region54: #{tpu_custom_call.1} parent=5 // pred_check_branch
        %301 = sbr.rel (%p299) target = $region56
      $region55: #{tpu_custom_call.1} parent=5 // pred_region
        %s302 = ssub.s32 %s15, 2
      $region56: #{tpu_custom_call.1} parent=5 // pred_fallthru
        _
    $region6: #{tpu_custom_call.1} parent=1 // loop_footer
      %s19 = sadd.s32 1, %s15
    $region7: #{tpu_custom_call.1} parent=1 // loop_footer_branch
      %14 = sbr.rel target = $region3
    $region8: #{tpu_custom_call.1} parent=1 // loop_exit
      _
    %303 = vsyncpa [#allocation4], 1
    %s304 = scalar_lea.sflag [#allocation4], 1
    %305 = vsyncpa %s304, 1
    %306 = vsyncpa [#allocation7], 1
    %s307 = scalar_lea.sflag [#allocation7], 1
    %308 = vsyncpa %s307, 1
    %309 = vsyncpa [#allocation5], 1
    %s310 = scalar_lea.sflag [#allocation5], 1
    %311 = vsyncpa %s310, 1

</llo_original>
